<compile_context>
chip_gen: v5e
topology: v5e:2x2
jax: 0.10.0
libtpu: 0.0.40
codegen_flags: <defaults>
</compile_context>

<pallas_src>
import functools

import jax
import jax.numpy as jnp
from jax.experimental import pallas as pl
from jax.experimental.pallas import tpu as pltpu


EMB_SIZES = (35, 10, 5, 7, 5, 5)  # vocab sizes of the 6 nn.Embedding tables


# ----------------------------------------------------------------------------
# Fused Pallas kernel: RGCN x2 + sigmoid + reparametrize + Z Z^T + sigmoid
# ----------------------------------------------------------------------------

def _fused_rgcn_vae_kernel(
    num_relations, out_embd,
    # inputs
    acat_ref,   # [N, R*N]       bf16  lane-concat, degree-normalized adjacency
    x_ref,      # [N, F0]        bf16  concatenated embeddings
    wcat1_ref,  # [F0, (R+1)*L]  bf16  [W_root1 | W_rel1_0 | ... | W_rel1_{R-1}]
    b1_ref,     # [1, L]         f32
    wcat2_ref,  # [L, (R+1)*2D]  bf16  [W_root2 | W_rel2_0 | ... | W_rel2_{R-1}]
    b2_ref,     # [1, 2D]        f32
    eps_ref,    # [N, D]         f32
    # outputs
    stats_ref,  # [N, 2D]        f32   sigmoid(conv2 out) = [mu | logvar]
    ahat_ref,   # [N, N]         f32   sigmoid(Z Z^T)
):
  f32, bf16 = jnp.float32, jnp.bfloat16
  r = num_relations
  d = out_embd
  l = b1_ref.shape[1]
  d2 = b2_ref.shape[1]

  acat = acat_ref[...]                                       # bf16 [N, R*N]
  x = x_ref[...]                                             # bf16 [N, F0]

  # ---- RGCN layer 1 ---------------------------------------------------------
  # One 128-lane MXU pass covers the root + all relation feature transforms.
  xw = jnp.dot(x, wcat1_ref[...], preferred_element_type=f32)    # [N, (R+1)*L]
  # Stack the per-relation products along sublanes -> [R*N, L]; the single wide
  # neighborhood matmul below has contraction K = R*N and the sum over
  # relations comes for free from the contraction.
  msg1 = jnp.concatenate(
      [xw[:, (i + 1) * l:(i + 2) * l] for i in range(r)], axis=0).astype(bf16)
  h = xw[:, :l] + b1_ref[...] + jnp.dot(acat, msg1,
                                        preferred_element_type=f32)
  h1 = jax.nn.sigmoid(h).astype(bf16)                            # [N, L]

  # ---- RGCN layer 2 (fused mu|logvar head: one [N, 2D] accumulator) ---------
  hw = jnp.dot(h1, wcat2_ref[...], preferred_element_type=f32)   # [N, (R+1)*2D]
  msg2 = jnp.concatenate(
      [hw[:, (i + 1) * d2:(i + 2) * d2] for i in range(r)], axis=0).astype(bf16)
  out2 = hw[:, :d2] + b2_ref[...] + jnp.dot(acat, msg2,
                                            preferred_element_type=f32)
  stats = jax.nn.sigmoid(out2)                                   # f32 [N, 2D]
  stats_ref[...] = stats

  # ---- reparametrize + generation, entirely in VMEM -------------------------
  mu = stats[:, :d]
  logvar = stats[:, d:]
  z = (eps_ref[...] * jnp.exp(0.5 * logvar) + mu).astype(bf16)   # [N, D]
  gram = jax.lax.dot_general(                                    # Z @ Z.T
      z, z, dimension_numbers=(((1,), (1,)), ((), ())),
      preferred_element_type=f32)
  ahat_ref[...] = jax.nn.sigmoid(gram)


def fused_rgcn_vae(acat, x_emb, params, eps, *, num_relations, out_embd):
  n = x_emb.shape[0]
  d2 = params["b2"].shape[1]

  # No grid: single invocation, every operand fully resident in VMEM (no
  # pointless double buffering of the O(N^2) adjacency / A_hat tiles).
  vmem = lambda: pl.BlockSpec(memory_space=pltpu.MemorySpace.VMEM)
  kernel = functools.partial(_fused_rgcn_vae_kernel, num_relations, out_embd)

  stats, a_hat = pl.pallas_call(
      kernel,
      out_shape=(
          jax.ShapeDtypeStruct((n, d2), jnp.float32),   # [mu | logvar]
          jax.ShapeDtypeStruct((n, n), jnp.float32),    # A_hat
      ),
      in_specs=[vmem() for _ in range(7)],
      out_specs=(vmem(), vmem()),
  )(acat, x_emb, params["w_cat1"], params["b1"],
    params["w_cat2"], params["b2"], eps)
  return stats, a_hat


# ----------------------------------------------------------------------------
# Parameters (same logical shapes as the PyTorch module; MXU weights in bf16,
# root + relation weights lane-concatenated once at init)
# ----------------------------------------------------------------------------

def init_params(key, in_embd, layer_embd, out_embd, num_relations):
  ks = jax.random.split(key, 10)
  f32, bf16 = jnp.float32, jnp.bfloat16
  params = {}
  params["emb"] = [
      jax.random.normal(ks[i], (EMB_SIZES[i], in_embd), f32) for i in range(6)]

  f0 = 6 * in_embd
  s1 = 1.0 / jnp.sqrt(f0)
  s2 = 1.0 / jnp.sqrt(layer_embd)

  w_root1 = jax.random.normal(ks[6], (f0, layer_embd), f32) * s1
  w_rel1 = jax.random.normal(
      ks[7], (num_relations, f0, layer_embd), f32) * s1
  w_root2 = jax.random.normal(ks[8], (layer_embd, 2 * out_embd), f32) * s2
  w_rel2 = jax.random.normal(
      ks[9], (num_relations, layer_embd, 2 * out_embd), f32) * s2

  # Lane-concatenate [root | rel_0 | ... | rel_{R-1}] so each layer's feature
  # transform is a single wide (128-lane at these sizes) MXU matmul.
  params["w_cat1"] = jnp.concatenate(
      [w_root1] + [w_rel1[r] for r in range(num_relations)], axis=1
  ).astype(bf16)
  params["b1"] = jnp.zeros((1, layer_embd), f32)
  params["w_cat2"] = jnp.concatenate(
      [w_root2] + [w_rel2[r] for r in range(num_relations)], axis=1
  ).astype(bf16)
  params["b2"] = jnp.zeros((1, 2 * out_embd), f32)
  return params


# ----------------------------------------------------------------------------
# Forward pass (pretrain branch): returns (A, A_hat, mu, logvar)
# ----------------------------------------------------------------------------

def rgcn_vae_pretrain(params, x, edge_index, edge_type, eps, *,
                      num_relations, out_embd):
  n = x.shape[0]
  f32, bf16 = jnp.float32, jnp.bfloat16

  # --- embedding lookup + concat (XLA glue: gather) --------------------------
  x_ = jnp.concatenate([params["emb"][i][x[:, i]] for i in range(6)], axis=1)
  x_bf = x_.astype(bf16)

  # --- dense adjacencies (XLA glue: scatter) ---------------------------------
  # A matches the torch loop:  A[edge_index[0, i], edge_index[1, i]] = 1
  A = jnp.zeros((n, n), f32).at[edge_index[0], edge_index[1]].set(1.0)
  # A_rel[r, dst, src] = 1 for each edge (src -> dst) with relation r
  A_rel = jnp.zeros((num_relations, n, n), f32).at[
      edge_type, edge_index[1], edge_index[0]].set(1.0)
  # Mean aggregation: fold 1/deg_r(dst) into the adjacency (f32 math, bf16
  # cast) and lane-concatenate relations:
  #   Acat[dst, r*N + src] = A_rel[r, dst, src] / deg_r(dst)
  deg = jnp.sum(A_rel, axis=2, keepdims=True)                    # [R, N, 1]
  a_norm = A_rel / jnp.where(deg > 0, deg, 1.0)
  acat = jnp.transpose(a_norm, (1, 0, 2)).reshape(
      n, num_relations * n).astype(bf16)

  # --- single fused Pallas kernel --------------------------------------------
  stats, A_hat = fused_rgcn_vae(acat, x_bf, params, eps,
                                num_relations=num_relations,
                                out_embd=out_embd)
  mu = stats[:, :out_embd]          # free XLA slices of the fused [N, 2D] out
  logvar = stats[:, out_embd:]
  return A, A_hat, mu, logvar


# ----------------------------------------------------------------------------
# Demo
# ----------------------------------------------------------------------------

if __name__ == "__main__":
  in_embd, layer_embd, out_embd = 8, 32, 16
  num_relations = 3
  N = 16

  key = jax.random.PRNGKey(0)
  kp, kx, ke, kt = jax.random.split(key, 4)

  params = init_params(kp, in_embd, layer_embd, out_embd, num_relations)

  # categorical node features x: [N, 6], column i valid for embedding table i
  maxvals = jnp.array(EMB_SIZES, dtype=jnp.int32)
  x = jax.random.randint(kx, (N, 6), 0, 1_000, dtype=jnp.int32) % maxvals[None, :]

  # ring graph, both directions: edge_index [2, 2N]; random relation types
  src = jnp.arange(N, dtype=jnp.int32)
  dst = (src + 1) % N
  edge_index = jnp.stack([jnp.concatenate([src, dst]),
                          jnp.concatenate([dst, src])], axis=0)
  edge_type = jax.random.randint(kt, (2 * N,), 0, num_relations, dtype=jnp.int32)

  # reparametrization noise (std.data.new(...).normal_() semantics, host-side)
  eps = jax.random.normal(ke, (N, out_embd), dtype=jnp.float32)

  fwd = jax.jit(functools.partial(rgcn_vae_pretrain,
                                  num_relations=num_relations,
                                  out_embd=out_embd))
  A, A_hat, mu, logvar = fwd(params, x, edge_index, edge_type, eps)
  jax.block_until_ready((A, A_hat, mu, logvar))

  assert A.shape == (N, N)
  assert A_hat.shape == (N, N)
  assert mu.shape == (N, out_embd)
  assert logvar.shape == (N, out_embd)
  assert bool(jnp.all(jnp.isfinite(A_hat)))
  assert bool(jnp.all(jnp.isfinite(mu)))
  assert bool(jnp.all(jnp.isfinite(logvar)))

  print("KERNEL_OK")
</pallas_src>

<mosaic_0001>
module attributes {stable_mosaic.version = 11 : i64} {
  func.func @_fused_rgcn_vae_kernel(%arg0: memref<16x48xbf16, #tpu.memory_space<vmem>>, %arg1: memref<16x48xbf16, #tpu.memory_space<vmem>>, %arg2: memref<48x128xbf16, #tpu.memory_space<vmem>>, %arg3: memref<1x32xf32, #tpu.memory_space<vmem>>, %arg4: memref<32x128xbf16, #tpu.memory_space<vmem>>, %arg5: memref<1x32xf32, #tpu.memory_space<vmem>>, %arg6: memref<16x16xf32, #tpu.memory_space<vmem>>, %arg7: memref<16x32xf32, #tpu.memory_space<vmem>>, %arg8: memref<16x16xf32, #tpu.memory_space<vmem>>) attributes {dimension_semantics = [], scalar_prefetch = 0 : i64, scratch_operands = 0 : i64, tpu.core_type = #tpu.core_type<tc>} {
    %c0 = arith.constant 0 : index
    %c0_0 = arith.constant 0 : index
    %0 = vector.load %arg0[%c0, %c0_0] : memref<16x48xbf16, #tpu.memory_space<vmem>>, vector<16x48xbf16>
    %c0_1 = arith.constant 0 : index
    %c0_2 = arith.constant 0 : index
    %1 = vector.load %arg1[%c0_1, %c0_2] : memref<16x48xbf16, #tpu.memory_space<vmem>>, vector<16x48xbf16>
    %c0_3 = arith.constant 0 : index
    %c0_4 = arith.constant 0 : index
    %2 = vector.load %arg2[%c0_3, %c0_4] : memref<48x128xbf16, #tpu.memory_space<vmem>>, vector<48x128xbf16>
    %cst = arith.constant dense<0.000000e+00> : vector<16x128xf32>
    %3 = tpu.matmul %1, %2, %cst {dimension_numbers = #tpu.dot_dimension_numbers<[1], [0], [0], [1], [0, 0, 1, 1], [], []>} : vector<16x48xbf16>, vector<48x128xbf16>, vector<16x128xf32> -> vector<16x128xf32>
    %4 = vector.extract_strided_slice %3 {offsets = [0, 32], sizes = [16, 32], strides = [1, 1]} : vector<16x128xf32> to vector<16x32xf32>
    %5 = vector.extract_strided_slice %3 {offsets = [0, 64], sizes = [16, 32], strides = [1, 1]} : vector<16x128xf32> to vector<16x32xf32>
    %6 = vector.extract_strided_slice %3 {offsets = [0, 96], sizes = [16, 32], strides = [1, 1]} : vector<16x128xf32> to vector<16x32xf32>
    %7 = tpu.concatenate %4, %5, %6 in 0 : vector<16x32xf32>, vector<16x32xf32>, vector<16x32xf32> -> vector<48x32xf32>
    %8 = arith.truncf %7 : vector<48x32xf32> to vector<48x32xbf16>
    %9 = vector.extract_strided_slice %3 {offsets = [0, 0], sizes = [16, 32], strides = [1, 1]} : vector<16x128xf32> to vector<16x32xf32>
    %c0_5 = arith.constant 0 : index
    %c0_6 = arith.constant 0 : index
    %10 = vector.load %arg3[%c0_5, %c0_6] : memref<1x32xf32, #tpu.memory_space<vmem>>, vector<1x32xf32>
    %11 = vector.broadcast %10 : vector<1x32xf32> to vector<16x32xf32>
    %12 = arith.addf %9, %11 : vector<16x32xf32>
    %cst_7 = arith.constant dense<0.000000e+00> : vector<16x32xf32>
    %13 = tpu.matmul %0, %8, %cst_7 {dimension_numbers = #tpu.dot_dimension_numbers<[1], [0], [0], [1], [0, 0, 1, 1], [], []>} : vector<16x48xbf16>, vector<48x32xbf16>, vector<16x32xf32> -> vector<16x32xf32>
    %14 = arith.addf %12, %13 : vector<16x32xf32>
    %15 = arith.negf %14 : vector<16x32xf32>
    %16 = math.exp %15 : vector<16x32xf32>
    %cst_8 = arith.constant 1.000000e+00 : f32
    %17 = vector.broadcast %cst_8 : f32 to vector<16x32xf32>
    %18 = arith.addf %17, %16 : vector<16x32xf32>
    %19 = arith.divf %17, %18 : vector<16x32xf32>
    %20 = arith.truncf %19 : vector<16x32xf32> to vector<16x32xbf16>
    %c0_9 = arith.constant 0 : index
    %c0_10 = arith.constant 0 : index
    %21 = vector.load %arg4[%c0_9, %c0_10] : memref<32x128xbf16, #tpu.memory_space<vmem>>, vector<32x128xbf16>
    %cst_11 = arith.constant dense<0.000000e+00> : vector<16x128xf32>
    %22 = tpu.matmul %20, %21, %cst_11 {dimension_numbers = #tpu.dot_dimension_numbers<[1], [0], [0], [1], [0, 0, 1, 1], [], []>} : vector<16x32xbf16>, vector<32x128xbf16>, vector<16x128xf32> -> vector<16x128xf32>
    %23 = vector.extract_strided_slice %22 {offsets = [0, 32], sizes = [16, 32], strides = [1, 1]} : vector<16x128xf32> to vector<16x32xf32>
    %24 = vector.extract_strided_slice %22 {offsets = [0, 64], sizes = [16, 32], strides = [1, 1]} : vector<16x128xf32> to vector<16x32xf32>
    %25 = vector.extract_strided_slice %22 {offsets = [0, 96], sizes = [16, 32], strides = [1, 1]} : vector<16x128xf32> to vector<16x32xf32>
    %26 = tpu.concatenate %23, %24, %25 in 0 : vector<16x32xf32>, vector<16x32xf32>, vector<16x32xf32> -> vector<48x32xf32>
    %27 = arith.truncf %26 : vector<48x32xf32> to vector<48x32xbf16>
    %28 = vector.extract_strided_slice %22 {offsets = [0, 0], sizes = [16, 32], strides = [1, 1]} : vector<16x128xf32> to vector<16x32xf32>
    %c0_12 = arith.constant 0 : index
    %c0_13 = arith.constant 0 : index
    %29 = vector.load %arg5[%c0_12, %c0_13] : memref<1x32xf32, #tpu.memory_space<vmem>>, vector<1x32xf32>
    %30 = vector.broadcast %29 : vector<1x32xf32> to vector<16x32xf32>
    %31 = arith.addf %28, %30 : vector<16x32xf32>
    %cst_14 = arith.constant dense<0.000000e+00> : vector<16x32xf32>
    %32 = tpu.matmul %0, %27, %cst_14 {dimension_numbers = #tpu.dot_dimension_numbers<[1], [0], [0], [1], [0, 0, 1, 1], [], []>} : vector<16x48xbf16>, vector<48x32xbf16>, vector<16x32xf32> -> vector<16x32xf32>
    %33 = arith.addf %31, %32 : vector<16x32xf32>
    %34 = arith.negf %33 : vector<16x32xf32>
    %35 = math.exp %34 : vector<16x32xf32>
    %cst_15 = arith.constant 1.000000e+00 : f32
    %36 = vector.broadcast %cst_15 : f32 to vector<16x32xf32>
    %37 = arith.addf %36, %35 : vector<16x32xf32>
    %38 = arith.divf %36, %37 : vector<16x32xf32>
    %c0_16 = arith.constant 0 : index
    %c0_17 = arith.constant 0 : index
    %39 = vector.load %arg7[%c0_16, %c0_17] : memref<16x32xf32, #tpu.memory_space<vmem>>, vector<16x32xf32>
    tpu.vector_store %arg7[%c0_16, %c0_17], %38 {strides = array<i32>} : memref<16x32xf32, #tpu.memory_space<vmem>>, vector<16x32xf32>,
    %40 = vector.extract_strided_slice %38 {offsets = [0, 0], sizes = [16, 16], strides = [1, 1]} : vector<16x32xf32> to vector<16x16xf32>
    %41 = vector.extract_strided_slice %38 {offsets = [0, 16], sizes = [16, 16], strides = [1, 1]} : vector<16x32xf32> to vector<16x16xf32>
    %c0_18 = arith.constant 0 : index
    %c0_19 = arith.constant 0 : index
    %42 = vector.load %arg6[%c0_18, %c0_19] : memref<16x16xf32, #tpu.memory_space<vmem>>, vector<16x16xf32>
    %cst_20 = arith.constant 5.000000e-01 : f32
    %43 = vector.broadcast %cst_20 : f32 to vector<16x16xf32>
    %44 = arith.mulf %43, %41 : vector<16x16xf32>
    %45 = math.exp %44 : vector<16x16xf32>
    %46 = arith.mulf %42, %45 : vector<16x16xf32>
    %47 = arith.addf %46, %40 : vector<16x16xf32>
    %48 = arith.truncf %47 : vector<16x16xf32> to vector<16x16xbf16>
    %cst_21 = arith.constant dense<0.000000e+00> : vector<16x16xf32>
    %49 = tpu.matmul %48, %48, %cst_21 {dimension_numbers = #tpu.dot_dimension_numbers<[1], [1], [0], [0], [0, 0, 1, 0], [], []>} : vector<16x16xbf16>, vector<16x16xbf16>, vector<16x16xf32> -> vector<16x16xf32>
    %50 = arith.negf %49 : vector<16x16xf32>
    %51 = math.exp %50 : vector<16x16xf32>
    %cst_22 = arith.constant 1.000000e+00 : f32
    %52 = vector.broadcast %cst_22 : f32 to vector<16x16xf32>
    %53 = arith.addf %52, %51 : vector<16x16xf32>
    %54 = arith.divf %52, %53 : vector<16x16xf32>
    %c0_23 = arith.constant 0 : index
    %c0_24 = arith.constant 0 : index
    %55 = vector.load %arg8[%c0_23, %c0_24] : memref<16x16xf32, #tpu.memory_space<vmem>>, vector<16x16xf32>
    tpu.vector_store %arg8[%c0_23, %c0_24], %54 {strides = array<i32>} : memref<16x16xf32, #tpu.memory_space<vmem>>, vector<16x16xf32>,
    return
  }
}

</mosaic_0001>

<llo_original>
// kernel: rgcn_vae_pretrain.1
$region0: #{rgcn_vae_pretrain.1}
  #allocation0 [shape = 'u32[]', space=smem, size = 0x4, offset = 0x4, fixed_abs, tag = 'smem constant byte address 0x4 - core index']
  #allocation1 [shape = 'u32[72,128]{1,0:T(1,128)}', space=vmem, size = 0x9000, scoped, tag = 'internal scratch']
  %s0 = inlined_call_operand.vmem [shape: bf16[16,48], index: 0, kind: input, shape index: {}]
  %s1 = inlined_call_operand.vmem [shape: bf16[16,48], index: 1, kind: input, shape index: {}]
  %s2 = inlined_call_operand.vmem [shape: bf16[48,128], index: 2, kind: input, shape index: {}]
  %s3 = inlined_call_operand.vmem [shape: f32[1,32], index: 3, kind: input, shape index: {}]
  %s4 = inlined_call_operand.vmem [shape: bf16[32,128], index: 4, kind: input, shape index: {}]
  %s5 = inlined_call_operand.vmem [shape: f32[1,32], index: 5, kind: input, shape index: {}]
  %s6 = inlined_call_operand.vmem [shape: f32[16,16], index: 6, kind: input, shape index: {}]
  %s7 = inlined_call_operand.vmem [shape: f32[16,32], index: 7, kind: output, shape index: {0}]
  %s8 = inlined_call_operand.hbm [shape: f32[16,16], index: 8, kind: output, shape index: {1}]
  %9 = xla_tuple %s7, %s8
  %s10 = sld [smem:[#allocation0]]
  $region46: #{rgcn_vae_pretrain.1} parent=0
    _
  %s12 = ssub.s32 1, %s10
  %s13 = scalar_select 0, %s12, %s10
  $region1: #{rgcn_vae_pretrain.1} parent=0
    #allocation2 [shape = 'u8[8192]{0}', space=vmem, size = 0x2000, scoped, tag = 'output window, operand 1, single buffered']
    #allocation3 [shape = 's32[1]{0}', space=sflag, size = 0x4, scoped, tag = 'scoped memory for rgcn_vae_pretrain.1']
    %14 = vsyncpa [#allocation3], 0
    // Predicated region
    $region2: #{rgcn_vae_pretrain.1} parent=1 // pred_check
      _
    $region3: #{rgcn_vae_pretrain.1} parent=1 // pred_check_branch
      %16 = sbr.rel (0) target = $region5
    $region4: #{rgcn_vae_pretrain.1} parent=1 // pred_region
      _
    $region5: #{rgcn_vae_pretrain.1} parent=1 // pred_fallthru
      _
    // Predicated region
    $region6: #{rgcn_vae_pretrain.1} parent=1 // pred_check
      _
    $region7: #{rgcn_vae_pretrain.1} parent=1 // pred_check_branch
      %18 = sbr.rel (0) target = $region9
    $region8: #{rgcn_vae_pretrain.1} parent=1 // pred_region
      _
    $region9: #{rgcn_vae_pretrain.1} parent=1 // pred_fallthru
      _
    // Predicated region
    $region10: #{rgcn_vae_pretrain.1} parent=1 // pred_check
      _
    $region11: #{rgcn_vae_pretrain.1} parent=1 // pred_check_branch
      %20 = sbr.rel (0) target = $region13
    $region12: #{rgcn_vae_pretrain.1} parent=1 // pred_region
      _
    $region13: #{rgcn_vae_pretrain.1} parent=1 // pred_fallthru
      _
    // Predicated region
    $region14: #{rgcn_vae_pretrain.1} parent=1 // pred_check
      _
    $region15: #{rgcn_vae_pretrain.1} parent=1 // pred_check_branch
      %22 = sbr.rel (0) target = $region17
    $region16: #{rgcn_vae_pretrain.1} parent=1 // pred_region
      _
    $region17: #{rgcn_vae_pretrain.1} parent=1 // pred_fallthru
      _
    // Predicated region
    $region18: #{rgcn_vae_pretrain.1} parent=1 // pred_check
      _
    $region19: #{rgcn_vae_pretrain.1} parent=1 // pred_check_branch
      %24 = sbr.rel (0) target = $region21
    $region20: #{rgcn_vae_pretrain.1} parent=1 // pred_region
      _
    $region21: #{rgcn_vae_pretrain.1} parent=1 // pred_fallthru
      _
    // Predicated region
    $region22: #{rgcn_vae_pretrain.1} parent=1 // pred_check
      _
    $region23: #{rgcn_vae_pretrain.1} parent=1 // pred_check_branch
      %26 = sbr.rel (0) target = $region25
    $region24: #{rgcn_vae_pretrain.1} parent=1 // pred_region
      _
    $region25: #{rgcn_vae_pretrain.1} parent=1 // pred_fallthru
      _
    // Predicated region
    $region26: #{rgcn_vae_pretrain.1} parent=1 // pred_check
      _
    $region27: #{rgcn_vae_pretrain.1} parent=1 // pred_check_branch
      %28 = sbr.rel (0) target = $region29
    $region28: #{rgcn_vae_pretrain.1} parent=1 // pred_region
      _
    $region29: #{rgcn_vae_pretrain.1} parent=1 // pred_fallthru
      _
    %v30 = vld [vmem:[%s0] sm:$0xf]
    %v31 = vld [vmem:[%s0 + $0x4] sm:$0xf]
    %v32 = vld [vmem:[%s1] sm:$0xf]
    %v33 = vld [vmem:[%s1 + $0x4] sm:$0xf]
    %v34 = vld [vmem:[%s2] sm:$0xf]
    %v35 = vld [vmem:[%s2 + $0x4] sm:$0xf]
    %v36 = vld [vmem:[%s2 + $0x8] sm:$0xf]
    %v37 = vld [vmem:[%s2 + $0xc] sm:$0xf]
    %v38 = vld [vmem:[%s2 + $0x10] sm:$0xf]
    %v39 = vld [vmem:[%s2 + $0x14] sm:$0xf]
    %v42 = vunpack.c.l.b16 %v32
    %v43 = vunpack.c.l.b16 %v33
    %v44 = vpack.c.b16 %v43, %v42
    %v51 = vunpack.c.l.b16 %v34
    %v52 = vunpack.c.l.b16 %v35
    %v53 = vunpack.c.l.b16 %v36
    %v54 = vunpack.c.l.b16 %v37
    %v55 = vunpack.c.l.b16 %v38
    %v56 = vunpack.c.l.b16 %v39
    %v57 = vpack.c.b16 %v52, %v51
    %v58 = vpack.c.b16 %v54, %v53
    %v59 = vpack.c.b16 %v56, %v55
    %vm63 = vcmask 392192
    %v65 = vsel %vm63, %v44, 0
    %67 = vmatpush.bf16.msra.mxu0 0
    %68 = vmatpush.bf16.msra.mxu0 0
    %69 = vmatpush.bf16.msra.mxu0 0
    %70 = vmatpush.bf16.msra.mxu0 0
    %71 = vmatpush.bf16.msra.mxu0 0
    %72 = vmatpush.bf16.msra.mxu0 %v59
    %73 = vmatpush.bf16.msra.mxu0 %v58
    %74 = vmatpush.bf16.msra.mxu0 %v57
    %75 = vmatmul.bf16.gmra.mxu0 %v65
    %v76 = vpop.f32.mrf.mxu0
    %v77 = vadd.f32 0.0, %v76
    %v78 = vpop.f32.mrf.mxu0
    %v79 = vadd.f32 0.0, %v78
    %80 = vdwg.mxu0
    %83 = vrot.lane.b32.xlu0 %v77, 96
    %v84 = vpop.permute.xlu0 %83
    %85 = vrot.lane.b32.xlu0 %v79, 96
    %v86 = vpop.permute.xlu0 %85
    %89 = vrot.lane.b32.xlu0 %v77, 64
    %v90 = vpop.permute.xlu0 %89
    %91 = vrot.lane.b32.xlu0 %v79, 64
    %v92 = vpop.permute.xlu0 %91
    %v95 = vpack.c.bf16 %v79, %v77
    %v96 = vpack.c.bf16 %v86, %v84
    %v97 = vpack.c.bf16 %v92, %v90
    %v98 = vld [vmem:[%s3] sm:$0x1]
    %v100 = vperm.slane %v98, 0
    %v102 = vadd.f32 %v77, %v100
    %v103 = vadd.f32 %v79, %v100
    %v106 = vunpack.c.l.b16 %v30
    %v107 = vunpack.c.l.b16 %v31
    %v108 = vpack.c.b16 %v107, %v106
    %112 = vrot.lane.b32.xlu0 %v95, 96
    %v113 = vpop.permute.xlu0 %112
    %114 = vrot.lane.b32.xlu0 %v96, 96
    %v115 = vpop.permute.xlu0 %114
    %116 = vrot.lane.b32.xlu0 %v97, 96
    %v117 = vpop.permute.xlu0 %116
    %v122 = vsel %vm63, %v108, 0
    %124 = vmatpush.bf16.msra.mxu0 0
    %125 = vmatpush.bf16.msra.mxu0 0
    %126 = vmatpush.bf16.msra.mxu0 0
    %127 = vmatpush.bf16.msra.mxu0 0
    %128 = vmatpush.bf16.msra.mxu0 0
    %129 = vmatpush.bf16.msra.mxu0 %v117
    %130 = vmatpush.bf16.msra.mxu0 %v115
    %131 = vmatpush.bf16.msra.mxu0 %v113
    %132 = vmatmul.bf16.gmra.mxu0 %v122
    %v133 = vpop.f32.mrf.mxu0
    %v134 = vadd.f32 0.0, %v133
    %v135 = vpop.f32.mrf.mxu0
    %v136 = vadd.f32 0.0, %v135
    %137 = vdwg.mxu0
    %v138 = vadd.f32 %v102, %v134
    %v139 = vadd.f32 %v103, %v136
    %v140 = vxor.u32 %v138, 2147483648
    %v141 = vxor.u32 %v139, 2147483648
    %v142 = vmul.f32 %v140, 1.442695
    %v143 = vpow.pop %v142
    %v144 = vmul.f32 %v141, 1.442695
    %v145 = vpow.pop %v144
    %v146 = vadd.f32 %v143, 1.0
    %v147 = vadd.f32 %v145, 1.0
    %v148 = vrcp.pop %v146
    %v149 = vmul.f32 %v146, %v148
    %v150 = vsub.f32 1.0, %v149
    %v151 = vmul.f32 %v148, %v150
    %v152 = vadd.f32 %v148, %v151
    %vm153 = vweird.f32 %v146
    %vm154 = vweird.f32 %v148
    %vm155 = vmor %vm153, %vm154
    %v156 = vsel %vm155, %v148, %v152
    %v157 = vand.u32 2147483647, %v146
    %vm158 = vcmp.eq.f32.partialorder %v157, 8.507059e+37
    %v159 = vand.u32 %v146, 2147483648
    %v160 = vor.u32 1.1754944e-38, %v159
    %v161 = vsel %vm158, %v160, %v156
    %v162 = vmul.f32 1.0, %v161
    %v163 = vrcp.pop %v147
    %v164 = vmul.f32 %v147, %v163
    %v165 = vsub.f32 1.0, %v164
    %v166 = vmul.f32 %v163, %v165
    %v167 = vadd.f32 %v163, %v166
    %vm168 = vweird.f32 %v147
    %vm169 = vweird.f32 %v163
    %vm170 = vmor %vm168, %vm169
    %v171 = vsel %vm170, %v163, %v167
    %v172 = vand.u32 2147483647, %v147
    %vm173 = vcmp.eq.f32.partialorder %v172, 8.507059e+37
    %v174 = vand.u32 %v147, 2147483648
    %v175 = vor.u32 1.1754944e-38, %v174
    %v176 = vsel %vm173, %v175, %v171
    %v177 = vmul.f32 1.0, %v176
    %v178 = vpack.c.bf16 %v177, %v162
    %v179 = vld [vmem:[%s4] sm:$0xf]
    %v180 = vld [vmem:[%s4 + $0x4] sm:$0xf]
    %v181 = vld [vmem:[%s4 + $0x8] sm:$0xf]
    %v182 = vld [vmem:[%s4 + $0xc] sm:$0xf]
    %v187 = vunpack.c.l.b16 %v179
    %v188 = vunpack.c.l.b16 %v180
    %v189 = vunpack.c.l.b16 %v181
    %v190 = vunpack.c.l.b16 %v182
    %v191 = vpack.c.b16 %v188, %v187
    %v192 = vpack.c.b16 %v190, %v189
    %vm195 = vcmask 261120
    %v197 = vsel %vm195, %v178, 0
    %199 = vmatpush.bf16.msra.mxu0 0
    %200 = vmatpush.bf16.msra.mxu0 0
    %201 = vmatpush.bf16.msra.mxu0 0
    %202 = vmatpush.bf16.msra.mxu0 0
    %203 = vmatpush.bf16.msra.mxu0 0
    %204 = vmatpush.bf16.msra.mxu0 0
    %205 = vmatpush.bf16.msra.mxu0 %v192
    %206 = vmatpush.bf16.msra.mxu0 %v191
    %207 = vmatmul.bf16.gmra.mxu0 %v197
    %v208 = vpop.f32.mrf.mxu0
    %v209 = vadd.f32 0.0, %v208
    %v210 = vpop.f32.mrf.mxu0
    %v211 = vadd.f32 0.0, %v210
    %212 = vdwg.mxu0
    %215 = vrot.lane.b32.xlu0 %v209, 96
    %v216 = vpop.permute.xlu0 %215
    %217 = vrot.lane.b32.xlu0 %v211, 96
    %v218 = vpop.permute.xlu0 %217
    %221 = vrot.lane.b32.xlu0 %v209, 64
    %v222 = vpop.permute.xlu0 %221
    %223 = vrot.lane.b32.xlu0 %v211, 64
    %v224 = vpop.permute.xlu0 %223
    %v227 = vpack.c.bf16 %v211, %v209
    %v228 = vpack.c.bf16 %v218, %v216
    %v229 = vpack.c.bf16 %v224, %v222
    %v230 = vld [vmem:[%s5] sm:$0x1]
    %v232 = vperm.slane %v230, 0
    %v234 = vadd.f32 %v209, %v232
    %v235 = vadd.f32 %v211, %v232
    %239 = vrot.lane.b32.xlu0 %v227, 96
    %v240 = vpop.permute.xlu0 %239
    %241 = vrot.lane.b32.xlu0 %v228, 96
    %v242 = vpop.permute.xlu0 %241
    %243 = vrot.lane.b32.xlu0 %v229, 96
    %v244 = vpop.permute.xlu0 %243
    %248 = vmatpush.bf16.msra.mxu0 0
    %249 = vmatpush.bf16.msra.mxu0 0
    %250 = vmatpush.bf16.msra.mxu0 0
    %251 = vmatpush.bf16.msra.mxu0 0
    %252 = vmatpush.bf16.msra.mxu0 0
    %253 = vmatpush.bf16.msra.mxu0 %v244
    %254 = vmatpush.bf16.msra.mxu0 %v242
    %255 = vmatpush.bf16.msra.mxu0 %v240
    %256 = vmatmul.bf16.gmra.mxu0 %v122
    %v257 = vpop.f32.mrf.mxu0
    %v258 = vadd.f32 0.0, %v257
    %v259 = vpop.f32.mrf.mxu0
    %v260 = vadd.f32 0.0, %v259
    %261 = vdwg.mxu0
    %v262 = vadd.f32 %v234, %v258
    %v263 = vadd.f32 %v235, %v260
    %v264 = vxor.u32 %v262, 2147483648
    %v265 = vxor.u32 %v263, 2147483648
    %v266 = vmul.f32 %v264, 1.442695
    %v267 = vpow.pop %v266
    %v268 = vmul.f32 %v265, 1.442695
    %v269 = vpow.pop %v268
    %v270 = vadd.f32 %v267, 1.0
    %v271 = vadd.f32 %v269, 1.0
    %v272 = vrcp.pop %v270
    %v273 = vmul.f32 %v270, %v272
    %v274 = vsub.f32 1.0, %v273
    %v275 = vmul.f32 %v272, %v274
    %v276 = vadd.f32 %v272, %v275
    %vm277 = vweird.f32 %v270
    %vm278 = vweird.f32 %v272
    %vm279 = vmor %vm277, %vm278
    %v280 = vsel %vm279, %v272, %v276
    %v281 = vand.u32 2147483647, %v270
    %vm282 = vcmp.eq.f32.partialorder %v281, 8.507059e+37
    %v283 = vand.u32 %v270, 2147483648
    %v284 = vor.u32 1.1754944e-38, %v283
    %v285 = vsel %vm282, %v284, %v280
    %v286 = vmul.f32 1.0, %v285
    %v287 = vrcp.pop %v271
    %v288 = vmul.f32 %v271, %v287
    %v289 = vsub.f32 1.0, %v288
    %v290 = vmul.f32 %v287, %v289
    %v291 = vadd.f32 %v287, %v290
    %vm292 = vweird.f32 %v271
    %vm293 = vweird.f32 %v287
    %vm294 = vmor %vm292, %vm293
    %v295 = vsel %vm294, %v287, %v291
    %v296 = vand.u32 2147483647, %v271
    %vm297 = vcmp.eq.f32.partialorder %v296, 8.507059e+37
    %v298 = vand.u32 %v271, 2147483648
    %v299 = vor.u32 1.1754944e-38, %v298
    %v300 = vsel %vm297, %v299, %v295
    %v301 = vmul.f32 1.0, %v300
    %302 = vst.msk [vmem:[%s7] sm:$0xff] %vm195, %v286
    %303 = vst.msk [vmem:[%s7 + $0x8] sm:$0xff] %vm195, %v301
    %v304 = vld [vmem:[%s6] sm:$0xff]
    %v305 = vld [vmem:[%s6 + $0x8] sm:$0xff]
    %v306 = vmul.f32 %v286, 0.5
    %v307 = vmul.f32 %v301, 0.5
    %v308 = vmul.f32 %v306, 1.442695
    %v309 = vpow.pop %v308
    %v310 = vmul.f32 %v307, 1.442695
    %v311 = vpow.pop %v310
    %314 = vrot.lane.b32.xlu0 %v309, 112
    %v315 = vpop.permute.xlu0 %314
    %316 = vrot.lane.b32.xlu0 %v311, 112
    %v317 = vpop.permute.xlu0 %316
    %v320 = vmul.f32 %v304, %v315
    %v321 = vmul.f32 %v305, %v317
    %v322 = vadd.f32 %v320, %v286
    %v323 = vadd.f32 %v321, %v301
    %v324 = vpack.c.bf16 %v323, %v322
    %vm325 = vcmask 130048
    %v327 = vsel %vm325, %v324, 0
    %329 = vmatpush.bf16.xpose.msra.mxu0 0
    %330 = vmatpush.bf16.xpose.msra.mxu0 0
    %331 = vmatpush.bf16.xpose.msra.mxu0 0
    %332 = vmatpush.bf16.xpose.msra.mxu0 0
    %333 = vmatpush.bf16.xpose.msra.mxu0 0
    %334 = vmatpush.bf16.xpose.msra.mxu0 0
    %335 = vmatpush.bf16.xpose.msra.mxu0 0
    %336 = vmatpush.bf16.xpose.msra.mxu0 %v327
    %337 = vmatmul.bf16.gmra.mxu0 %v327
    %v338 = vpop.f32.mrf.mxu0
    %v339 = vadd.f32 0.0, %v338
    %v340 = vpop.f32.mrf.mxu0
    %v341 = vadd.f32 0.0, %v340
    %342 = vdwg.mxu0
    %v343 = vxor.u32 %v339, 2147483648
    %v344 = vxor.u32 %v341, 2147483648
    %v345 = vmul.f32 %v343, 1.442695
    %v346 = vpow.pop %v345
    %v347 = vmul.f32 %v344, 1.442695
    %v348 = vpow.pop %v347
    %v349 = vadd.f32 %v346, 1.0
    %v350 = vadd.f32 %v348, 1.0
    %v351 = vrcp.pop %v349
    %v352 = vmul.f32 %v349, %v351
    %v353 = vsub.f32 1.0, %v352
    %v354 = vmul.f32 %v351, %v353
    %v355 = vadd.f32 %v351, %v354
    %vm356 = vweird.f32 %v349
    %vm357 = vweird.f32 %v351
    %vm358 = vmor %vm356, %vm357
    %v359 = vsel %vm358, %v351, %v355
    %v360 = vand.u32 2147483647, %v349
    %vm361 = vcmp.eq.f32.partialorder %v360, 8.507059e+37
    %v362 = vand.u32 %v349, 2147483648
    %v363 = vor.u32 1.1754944e-38, %v362
    %v364 = vsel %vm361, %v363, %v359
    %v365 = vmul.f32 1.0, %v364
    %v366 = vrcp.pop %v350
    %v367 = vmul.f32 %v350, %v366
    %v368 = vsub.f32 1.0, %v367
    %v369 = vmul.f32 %v366, %v368
    %v370 = vadd.f32 %v366, %v369
    %vm371 = vweird.f32 %v350
    %vm372 = vweird.f32 %v366
    %vm373 = vmor %vm371, %vm372
    %v374 = vsel %vm373, %v366, %v370
    %v375 = vand.u32 2147483647, %v350
    %vm376 = vcmp.eq.f32.partialorder %v375, 8.507059e+37
    %v377 = vand.u32 %v350, 2147483648
    %v378 = vor.u32 1.1754944e-38, %v377
    %v379 = vsel %vm376, %v378, %v374
    %v380 = vmul.f32 1.0, %v379
    %381 = vst.msk [vmem:[#allocation2] sm:$0xff] %vm325, %v365
    %382 = vst.msk [vmem:[#allocation2 + $0x8] sm:$0xff] %vm325, %v380
    // Predicated region
    $region30: #{rgcn_vae_pretrain.1} parent=1 // pred_check
      _
    $region31: #{rgcn_vae_pretrain.1} parent=1 // pred_check_branch
      %384 = sbr.rel (0) target = $region33
    $region32: #{rgcn_vae_pretrain.1} parent=1 // pred_region
      _
    $region33: #{rgcn_vae_pretrain.1} parent=1 // pred_fallthru
      _
    // Predicated region
    $region34: #{rgcn_vae_pretrain.1} parent=1 // pred_check
      _
    $region35: #{rgcn_vae_pretrain.1} parent=1 // pred_check_branch
      %386 = sbr.rel (0) target = $region37
    $region36: #{rgcn_vae_pretrain.1} parent=1 // pred_region
      %388 = vsyncadd [#allocation3], 0
      %s389 = sshll.u32 [#allocation2], 4
      %s390 = int_to_ptr.vmem [resolvable:$true] %s389
      %s391 = sshll.u32 %s8, 4
      %s392 = int_to_ptr.hbm [resolvable:$true] %s391
      %397 = dma.vmem_to_hbm [thread:$0]  %s390, 256, %s392, [#allocation3], 128, 128, 8
    $region37: #{rgcn_vae_pretrain.1} parent=1 // pred_fallthru
      _
    // Predicated region
    $region38: #{rgcn_vae_pretrain.1} parent=1 // pred_check
      _
    $region39: #{rgcn_vae_pretrain.1} parent=1 // pred_check_branch
      %399 = sbr.rel (0) target = $region41
    $region40: #{rgcn_vae_pretrain.1} parent=1 // pred_region
      _
    $region41: #{rgcn_vae_pretrain.1} parent=1 // pred_fallthru
      _
    // Predicated region
    $region42: #{rgcn_vae_pretrain.1} parent=1 // pred_check
      _
    $region43: #{rgcn_vae_pretrain.1} parent=1 // pred_check_branch
      %401 = sbr.rel (0) target = $region45
    $region44: #{rgcn_vae_pretrain.1} parent=1 // pred_region
      %403 = dma.done [#allocation3], 256
    $region45: #{rgcn_vae_pretrain.1} parent=1 // pred_fallthru
      _
    %404 = vsyncpa [#allocation3], 1

</llo_original>
